<compile_context>
chip_gen: v7x
topology: tpu7x:2x2x1
jax: 0.10.0
libtpu: 0.0.40
codegen_flags: <defaults>
</compile_context>

<pallas_src>
import jax
import jax.numpy as jnp
from jax.experimental import pallas as pl
from jax.experimental.pallas import tpu as pltpu

LANE = 128
SUBLANE = 8
PACK = 4  # samples packed side-by-side along the 128-lane axis (4 * 32 = 128)


def _round_up(x, m):
    return (x + m - 1) // m * m


def decoder_kernel(x_ref,
                   w1_ref, b1_ref,
                   w2_ref, b2_ref,
                   w3_ref, b3_ref,
                   w4_ref, b4_ref,
                   w5_ref, b5_ref,
                   o_ref):
    """Fused 5-layer MLP chain; intermediates never leave vregs/VMEM.

    Each x row holds PACK samples (features concatenated along lanes); the
    weights are block-diagonal so per-sample math is exact (no leakage).
    """
    h = x_ref[...]

    def linear(h, w_ref, b_ref):
        # MXU matmul with f32 accumulation.  Weights were pre-cast to the
        # compute dtype in the wrapper; only the activation is cast here
        # (a no-op in the f32 path).  Bias add stays f32 on the VPU.
        y = jnp.dot(h.astype(w_ref.dtype), w_ref[...],
                    preferred_element_type=jnp.float32)
        return y + b_ref[...]

    # Mlp_Uint: Linear -> Tanh -> Linear -> Tanh -> Linear -> Tanh -> Linear
    h = jnp.tanh(linear(h, w1_ref, b1_ref))
    h = jnp.tanh(linear(h, w2_ref, b2_ref))
    h = jnp.tanh(linear(h, w3_ref, b3_ref))
    h = linear(h, w4_ref, b4_ref)
    # fc_out: Tanh -> Linear
    h = jnp.tanh(h)
    o_ref[...] = linear(h, w5_ref, b5_ref).astype(o_ref.dtype)


def decoder_forward(x, params, *, tile_rows=2048, compute_dtype=jnp.bfloat16):
    """Pallas forward.  `params` are unpadded (in,out) weights / (1,out) biases."""
    (w1, b1, w2, b2, w3, b3, w4, b4, w5, b5) = params
    B, in_size = x.shape
    out_size = w5.shape[1]

    # --- Pack PACK samples per row: block-diagonal weights, tiled biases.
    #     (One-time, tiny wrapper-side ops; weights are 32x32.) ---
    def pack_w(w):
        return jnp.kron(jnp.eye(PACK, dtype=w.dtype), w).astype(compute_dtype)

    def pack_b(b):
        return jnp.tile(b, (1, PACK)).astype(jnp.float32)

    pw = [pack_w(w1), pack_b(b1), pack_w(w2), pack_b(b2),
          pack_w(w3), pack_b(b3), pack_w(w4), pack_b(b4),
          pack_w(w5), pack_b(b5)]
    in_p = pw[0].shape[0]    # PACK * in_size   (= 128 for encode_size=8)
    out_p = pw[8].shape[1]   # PACK * out_size

    # --- Row tiling.  The (B, in) -> (rows, PACK*in) packing is a pure
    #     row-major reshape (view); padding only when B % (PACK*tile) != 0. ---
    rows = -(-B // PACK)
    if rows <= SUBLANE:
        tile = rows                      # single block (full-dim block is legal)
    else:
        # >= 2 grid steps so megacore parts (v7x) can shard the batch axis.
        tile = max(SUBLANE,
                   min(tile_rows, _round_up(-(-rows // 2), SUBLANE)))
    rows_pad = _round_up(rows, tile)
    b_pad = rows_pad * PACK

    if b_pad != B:
        x_in = jnp.zeros((b_pad, in_size), x.dtype).at[:B].set(x)
    else:
        x_in = x
    x_rows = x_in.reshape(rows_pad, in_p)

    grid = (rows_pad // tile,)
    x_spec = pl.BlockSpec((tile, in_p), lambda i: (i, 0))
    o_spec = pl.BlockSpec((tile, out_p), lambda i: (i, 0))
    # Weights/biases: same block every grid step -> stay VMEM-resident.
    in_specs = [x_spec] + [pl.BlockSpec(p.shape, lambda i: (0, 0)) for p in pw]

    # Advisory cost estimate (hardware work on the packed problem).
    flops = 2 * rows_pad * sum(int(pw[k].shape[0]) * int(pw[k].shape[1])
                               for k in (0, 2, 4, 6, 8))
    transcendentals = 4 * rows_pad * int(pw[2].shape[1])
    param_bytes = sum(int(p.size) * p.dtype.itemsize for p in pw)
    bytes_accessed = (int(x_rows.size) * x_rows.dtype.itemsize
                      + rows_pad * out_p * 4 + param_bytes)

    y_rows = pl.pallas_call(
        decoder_kernel,
        out_shape=jax.ShapeDtypeStruct((rows_pad, out_p), jnp.float32),
        grid=grid,
        in_specs=in_specs,
        out_specs=o_spec,
        compiler_params=pltpu.CompilerParams(
            dimension_semantics=("parallel",)),
        cost_estimate=pl.CostEstimate(
            flops=flops,
            transcendentals=transcendentals,
            bytes_accessed=bytes_accessed),
    )(x_rows, *pw)

    # Undo the packing (pure view) and strip any batch padding.
    y = y_rows.reshape(b_pad, out_size)
    return y if b_pad == B else y[:B]


def init_params(key, in_size, l1, l2, l3, out_size):
    """Deterministic synthetic parameters.  Weights (in,out); biases (1,out)."""
    dims = [(in_size, l1), (l1, l2), (l2, l3), (l3, l3), (l3, out_size)]
    params = []
    for (din, dout) in dims:
        key, kw, kb = jax.random.split(key, 3)
        scale = 1.0 / jnp.sqrt(jnp.float32(din))
        w = jax.random.uniform(kw, (din, dout), jnp.float32, -scale, scale)
        b = jax.random.uniform(kb, (1, dout), jnp.float32, -scale, scale)
        params += [w, b]
    return tuple(params)


def reference_forward(x, params):
    (w1, b1, w2, b2, w3, b3, w4, b4, w5, b5) = params
    h = jnp.tanh(x @ w1 + b1)
    h = jnp.tanh(h @ w2 + b2)
    h = jnp.tanh(h @ w3 + b3)
    h = h @ w4 + b4
    h = jnp.tanh(h)
    return h @ w5 + b5


if __name__ == "__main__":
    # Small config consistent with the module:
    #   aemlp.encode_size = 8  -> decoder input = 8 * 4 = 32
    #   de.layer1 = de.layer2 = de.layer3 = 32, output_size = 16
    encode_size = 8
    in_size = encode_size * 4
    l1, l2, l3 = 32, 32, 32
    out_size = 16
    batch = 8
    # TODO(synk): at batch ~8 this call is pure launch overhead; in production
    # fuse it with the encoder or batch many decoder invocations per call.

    key = jax.random.PRNGKey(0)
    key, kx = jax.random.split(key)
    x = jax.random.normal(kx, (batch, in_size), jnp.float32)
    params = init_params(key, in_size, l1, l2, l3, out_size)
    y_ref = reference_forward(x, params)

    # Default path: bf16 MXU operands (MXU-native on v5e/v6e/v7x), f32
    # accumulation + f32 tanh/bias.  Looser tolerance for bf16 operands.
    y = jax.block_until_ready(decoder_forward(x, params))
    assert y.shape == (batch, out_size)
    assert jnp.allclose(y, y_ref, atol=5e-2, rtol=5e-2)

    # Full-f32 operand path; tolerance allows Mosaic's default f32 matmul
    # decomposition on the MXU.
    y_f32 = jax.block_until_ready(
        decoder_forward(x, params, compute_dtype=jnp.float32))
    assert jnp.allclose(y_f32, y_ref, atol=1e-4, rtol=1e-4)

    print("KERNEL_OK")
</pallas_src>

<mosaic_0001>
module attributes {stable_mosaic.version = 11 : i64} {
  func.func @decoder_kernel(%arg0: i32, %arg1: memref<2x128xf32, #tpu.memory_space<vmem>>, %arg2: memref<128x128xbf16, #tpu.memory_space<vmem>>, %arg3: memref<1x128xf32, #tpu.memory_space<vmem>>, %arg4: memref<128x128xbf16, #tpu.memory_space<vmem>>, %arg5: memref<1x128xf32, #tpu.memory_space<vmem>>, %arg6: memref<128x128xbf16, #tpu.memory_space<vmem>>, %arg7: memref<1x128xf32, #tpu.memory_space<vmem>>, %arg8: memref<128x128xbf16, #tpu.memory_space<vmem>>, %arg9: memref<1x128xf32, #tpu.memory_space<vmem>>, %arg10: memref<128x64xbf16, #tpu.memory_space<vmem>>, %arg11: memref<1x64xf32, #tpu.memory_space<vmem>>, %arg12: memref<2x64xf32, #tpu.memory_space<vmem>>) attributes {dimension_semantics = [#tpu.dimension_semantics<parallel>], iteration_bounds = array<i64: 1>, scalar_prefetch = 0 : i64, scratch_operands = 0 : i64, tpu.core_type = #tpu.core_type<tc>, window_params = [{transform_indices = @transform_0, window_bounds = array<i64: 2, 128>}, {pipeline_mode = #tpu.pipeline_mode<synchronous>, transform_indices = @transform_1, window_bounds = array<i64: 128, 128>}, {pipeline_mode = #tpu.pipeline_mode<synchronous>, transform_indices = @transform_2, window_bounds = array<i64: 1, 128>}, {pipeline_mode = #tpu.pipeline_mode<synchronous>, transform_indices = @transform_3, window_bounds = array<i64: 128, 128>}, {pipeline_mode = #tpu.pipeline_mode<synchronous>, transform_indices = @transform_4, window_bounds = array<i64: 1, 128>}, {pipeline_mode = #tpu.pipeline_mode<synchronous>, transform_indices = @transform_5, window_bounds = array<i64: 128, 128>}, {pipeline_mode = #tpu.pipeline_mode<synchronous>, transform_indices = @transform_6, window_bounds = array<i64: 1, 128>}, {pipeline_mode = #tpu.pipeline_mode<synchronous>, transform_indices = @transform_7, window_bounds = array<i64: 128, 128>}, {pipeline_mode = #tpu.pipeline_mode<synchronous>, transform_indices = @transform_8, window_bounds = array<i64: 1, 128>}, {pipeline_mode = #tpu.pipeline_mode<synchronous>, transform_indices = @transform_9, window_bounds = array<i64: 128, 64>}, {pipeline_mode = #tpu.pipeline_mode<synchronous>, transform_indices = @transform_10, window_bounds = array<i64: 1, 64>}, {transform_indices = @transform_11, window_bounds = array<i64: 2, 64>}]} {
    %c0 = arith.constant 0 : index
    %c0_0 = arith.constant 0 : index
    %0 = vector.load %arg1[%c0, %c0_0] : memref<2x128xf32, #tpu.memory_space<vmem>>, vector<2x128xf32>
    %1 = arith.truncf %0 : vector<2x128xf32> to vector<2x128xbf16>
    %c0_1 = arith.constant 0 : index
    %c0_2 = arith.constant 0 : index
    %2 = vector.load %arg2[%c0_1, %c0_2] : memref<128x128xbf16, #tpu.memory_space<vmem>>, vector<128x128xbf16>
    %cst = arith.constant dense<0.000000e+00> : vector<2x128xf32>
    %3 = tpu.matmul %1, %2, %cst {dimension_numbers = #tpu.dot_dimension_numbers<[1], [0], [0], [1], [0, 0, 1, 1], [], []>} : vector<2x128xbf16>, vector<128x128xbf16>, vector<2x128xf32> -> vector<2x128xf32>
    %c0_3 = arith.constant 0 : index
    %c0_4 = arith.constant 0 : index
    %4 = vector.load %arg3[%c0_3, %c0_4] : memref<1x128xf32, #tpu.memory_space<vmem>>, vector<1x128xf32>
    %5 = vector.broadcast %4 : vector<1x128xf32> to vector<2x128xf32>
    %6 = arith.addf %3, %5 : vector<2x128xf32>
    %7 = math.tanh %6 : vector<2x128xf32>
    %8 = arith.truncf %7 : vector<2x128xf32> to vector<2x128xbf16>
    %c0_5 = arith.constant 0 : index
    %c0_6 = arith.constant 0 : index
    %9 = vector.load %arg4[%c0_5, %c0_6] : memref<128x128xbf16, #tpu.memory_space<vmem>>, vector<128x128xbf16>
    %cst_7 = arith.constant dense<0.000000e+00> : vector<2x128xf32>
    %10 = tpu.matmul %8, %9, %cst_7 {dimension_numbers = #tpu.dot_dimension_numbers<[1], [0], [0], [1], [0, 0, 1, 1], [], []>} : vector<2x128xbf16>, vector<128x128xbf16>, vector<2x128xf32> -> vector<2x128xf32>
    %c0_8 = arith.constant 0 : index
    %c0_9 = arith.constant 0 : index
    %11 = vector.load %arg5[%c0_8, %c0_9] : memref<1x128xf32, #tpu.memory_space<vmem>>, vector<1x128xf32>
    %12 = vector.broadcast %11 : vector<1x128xf32> to vector<2x128xf32>
    %13 = arith.addf %10, %12 : vector<2x128xf32>
    %14 = math.tanh %13 : vector<2x128xf32>
    %15 = arith.truncf %14 : vector<2x128xf32> to vector<2x128xbf16>
    %c0_10 = arith.constant 0 : index
    %c0_11 = arith.constant 0 : index
    %16 = vector.load %arg6[%c0_10, %c0_11] : memref<128x128xbf16, #tpu.memory_space<vmem>>, vector<128x128xbf16>
    %cst_12 = arith.constant dense<0.000000e+00> : vector<2x128xf32>
    %17 = tpu.matmul %15, %16, %cst_12 {dimension_numbers = #tpu.dot_dimension_numbers<[1], [0], [0], [1], [0, 0, 1, 1], [], []>} : vector<2x128xbf16>, vector<128x128xbf16>, vector<2x128xf32> -> vector<2x128xf32>
    %c0_13 = arith.constant 0 : index
    %c0_14 = arith.constant 0 : index
    %18 = vector.load %arg7[%c0_13, %c0_14] : memref<1x128xf32, #tpu.memory_space<vmem>>, vector<1x128xf32>
    %19 = vector.broadcast %18 : vector<1x128xf32> to vector<2x128xf32>
    %20 = arith.addf %17, %19 : vector<2x128xf32>
    %21 = math.tanh %20 : vector<2x128xf32>
    %22 = arith.truncf %21 : vector<2x128xf32> to vector<2x128xbf16>
    %c0_15 = arith.constant 0 : index
    %c0_16 = arith.constant 0 : index
    %23 = vector.load %arg8[%c0_15, %c0_16] : memref<128x128xbf16, #tpu.memory_space<vmem>>, vector<128x128xbf16>
    %cst_17 = arith.constant dense<0.000000e+00> : vector<2x128xf32>
    %24 = tpu.matmul %22, %23, %cst_17 {dimension_numbers = #tpu.dot_dimension_numbers<[1], [0], [0], [1], [0, 0, 1, 1], [], []>} : vector<2x128xbf16>, vector<128x128xbf16>, vector<2x128xf32> -> vector<2x128xf32>
    %c0_18 = arith.constant 0 : index
    %c0_19 = arith.constant 0 : index
    %25 = vector.load %arg9[%c0_18, %c0_19] : memref<1x128xf32, #tpu.memory_space<vmem>>, vector<1x128xf32>
    %26 = vector.broadcast %25 : vector<1x128xf32> to vector<2x128xf32>
    %27 = arith.addf %24, %26 : vector<2x128xf32>
    %28 = math.tanh %27 : vector<2x128xf32>
    %29 = arith.truncf %28 : vector<2x128xf32> to vector<2x128xbf16>
    %c0_20 = arith.constant 0 : index
    %c0_21 = arith.constant 0 : index
    %30 = vector.load %arg10[%c0_20, %c0_21] : memref<128x64xbf16, #tpu.memory_space<vmem>>, vector<128x64xbf16>
    %cst_22 = arith.constant dense<0.000000e+00> : vector<2x64xf32>
    %31 = tpu.matmul %29, %30, %cst_22 {dimension_numbers = #tpu.dot_dimension_numbers<[1], [0], [0], [1], [0, 0, 1, 1], [], []>} : vector<2x128xbf16>, vector<128x64xbf16>, vector<2x64xf32> -> vector<2x64xf32>
    %c0_23 = arith.constant 0 : index
    %c0_24 = arith.constant 0 : index
    %32 = vector.load %arg11[%c0_23, %c0_24] : memref<1x64xf32, #tpu.memory_space<vmem>>, vector<1x64xf32>
    %33 = vector.broadcast %32 : vector<1x64xf32> to vector<2x64xf32>
    %34 = arith.addf %31, %33 : vector<2x64xf32>
    %c0_25 = arith.constant 0 : index
    %c0_26 = arith.constant 0 : index
    %35 = vector.load %arg12[%c0_25, %c0_26] : memref<2x64xf32, #tpu.memory_space<vmem>>, vector<2x64xf32>
    tpu.vector_store %arg12[%c0_25, %c0_26], %34 {strides = array<i32>} : memref<2x64xf32, #tpu.memory_space<vmem>>, vector<2x64xf32>,
    return
  }
  func.func @transform_0(%arg0: i32) -> (i32, i32) {
    %c0_i32 = arith.constant 0 : i32
    %c0_i32_0 = arith.constant 0 : i32
    return %arg0, %c0_i32 : i32, i32
  }
  func.func @transform_1(%arg0: i32) -> (i32, i32) {
    %c0_i32 = arith.constant 0 : i32
    %c0_i32_0 = arith.constant 0 : i32
    %c0_i32_1 = arith.constant 0 : i32
    return %c0_i32, %c0_i32_0 : i32, i32
  }
  func.func @transform_2(%arg0: i32) -> (i32, i32) {
    %c0_i32 = arith.constant 0 : i32
    %c0_i32_0 = arith.constant 0 : i32
    %c0_i32_1 = arith.constant 0 : i32
    return %c0_i32, %c0_i32_0 : i32, i32
  }
  func.func @transform_3(%arg0: i32) -> (i32, i32) {
    %c0_i32 = arith.constant 0 : i32
    %c0_i32_0 = arith.constant 0 : i32
    %c0_i32_1 = arith.constant 0 : i32
    return %c0_i32, %c0_i32_0 : i32, i32
  }
  func.func @transform_4(%arg0: i32) -> (i32, i32) {
    %c0_i32 = arith.constant 0 : i32
    %c0_i32_0 = arith.constant 0 : i32
    %c0_i32_1 = arith.constant 0 : i32
    return %c0_i32, %c0_i32_0 : i32, i32
  }
  func.func @transform_5(%arg0: i32) -> (i32, i32) {
    %c0_i32 = arith.constant 0 : i32
    %c0_i32_0 = arith.constant 0 : i32
    %c0_i32_1 = arith.constant 0 : i32
    return %c0_i32, %c0_i32_0 : i32, i32
  }
  func.func @transform_6(%arg0: i32) -> (i32, i32) {
    %c0_i32 = arith.constant 0 : i32
    %c0_i32_0 = arith.constant 0 : i32
    %c0_i32_1 = arith.constant 0 : i32
    return %c0_i32, %c0_i32_0 : i32, i32
  }
  func.func @transform_7(%arg0: i32) -> (i32, i32) {
    %c0_i32 = arith.constant 0 : i32
    %c0_i32_0 = arith.constant 0 : i32
    %c0_i32_1 = arith.constant 0 : i32
    return %c0_i32, %c0_i32_0 : i32, i32
  }
  func.func @transform_8(%arg0: i32) -> (i32, i32) {
    %c0_i32 = arith.constant 0 : i32
    %c0_i32_0 = arith.constant 0 : i32
    %c0_i32_1 = arith.constant 0 : i32
    return %c0_i32, %c0_i32_0 : i32, i32
  }
  func.func @transform_9(%arg0: i32) -> (i32, i32) {
    %c0_i32 = arith.constant 0 : i32
    %c0_i32_0 = arith.constant 0 : i32
    %c0_i32_1 = arith.constant 0 : i32
    return %c0_i32, %c0_i32_0 : i32, i32
  }
  func.func @transform_10(%arg0: i32) -> (i32, i32) {
    %c0_i32 = arith.constant 0 : i32
    %c0_i32_0 = arith.constant 0 : i32
    %c0_i32_1 = arith.constant 0 : i32
    return %c0_i32, %c0_i32_0 : i32, i32
  }
  func.func @transform_11(%arg0: i32) -> (i32, i32) {
    %c0_i32 = arith.constant 0 : i32
    %c0_i32_0 = arith.constant 0 : i32
    return %arg0, %c0_i32 : i32, i32
  }
}

</mosaic_0001>

<llo_original>
// kernel: tpu_custom_call.1
$region0: #{tpu_custom_call.1}
  #allocation0 [shape = 'u32[]', space=smem, size = 0x4, offset = 0x4, fixed_abs, tag = 'smem constant byte address 0x4 - core index']
  #allocation1 [shape = 'u32[144,128]{1,0:T(1,128)}', space=vmem, size = 0x12000, scoped, tag = 'internal scratch']
  %s0 = inlined_call_operand.vmem [shape: f32[2,128], index: 0, kind: input, shape index: {}]
  %s1 = inlined_call_operand.vmem [shape: bf16[128,128], index: 1, kind: input, shape index: {}]
  %s2 = inlined_call_operand.vmem [shape: f32[1,128], index: 2, kind: input, shape index: {}]
  %s3 = inlined_call_operand.hbm [shape: bf16[128,128], index: 3, kind: input, shape index: {}]
  %s4 = inlined_call_operand.vmem [shape: f32[1,128], index: 4, kind: input, shape index: {}]
  %s5 = inlined_call_operand.hbm [shape: bf16[128,128], index: 5, kind: input, shape index: {}]
  %s6 = inlined_call_operand.vmem [shape: f32[1,128], index: 6, kind: input, shape index: {}]
  %s7 = inlined_call_operand.hbm [shape: bf16[128,128], index: 7, kind: input, shape index: {}]
  %s8 = inlined_call_operand.vmem [shape: f32[1,128], index: 8, kind: input, shape index: {}]
  %s9 = inlined_call_operand.vmem [shape: bf16[128,64], index: 9, kind: input, shape index: {}]
  %s10 = inlined_call_operand.vmem [shape: f32[1,64], index: 10, kind: input, shape index: {}]
  %s11 = inlined_call_operand.hbm [shape: f32[2,64], index: 11, kind: output, shape index: {}]
  %s12 = sld [smem:[#allocation0]]
  $region66: #{tpu_custom_call.1} parent=0
    _
  %s14 = ssub.s32 1, %s12
  %s15 = scalar_select 0, %s14, %s12
  $region1: #{tpu_custom_call.1} parent=0
    #allocation2 [shape = 'u8[32768]{0}', space=vmem, size = 0x8000, scoped, tag = 'input window, operand 3, single buffered']
    #allocation3 [shape = 's32[1]{0}', space=sflag, size = 0x4, scoped, tag = 'scoped memory for tpu_custom_call.1']
    #allocation4 [shape = 's32[1]{0}', space=sflag, size = 0x4, scoped, tag = 'scoped memory for tpu_custom_call.1']
    #allocation5 [shape = 'u8[32768]{0}', space=vmem, size = 0x8000, scoped, tag = 'input window, operand 5, single buffered']
    #allocation6 [shape = 's32[1]{0}', space=sflag, size = 0x4, scoped, tag = 'scoped memory for tpu_custom_call.1']
    #allocation7 [shape = 'u8[32768]{0}', space=vmem, size = 0x8000, scoped, tag = 'input window, operand 7, single buffered']
    #allocation8 [shape = 'u8[1024]{0}', space=vmem, size = 0x400, scoped, tag = 'output window, operand 0, single buffered']
    %16 = vsyncpa [#allocation3], 0
    %17 = vsyncpa [#allocation6], 0
    %18 = vsyncpa [#allocation4], 0
    // Predicated region
    $region2: #{tpu_custom_call.1} parent=1 // pred_check
      _
    $region3: #{tpu_custom_call.1} parent=1 // pred_check_branch
      %20 = sbr.rel (0) target = $region5
    $region4: #{tpu_custom_call.1} parent=1 // pred_region
      _
    $region5: #{tpu_custom_call.1} parent=1 // pred_fallthru
      _
    // Predicated region
    $region6: #{tpu_custom_call.1} parent=1 // pred_check
      _
    $region7: #{tpu_custom_call.1} parent=1 // pred_check_branch
      %22 = sbr.rel (0) target = $region9
    $region8: #{tpu_custom_call.1} parent=1 // pred_region
      _
    $region9: #{tpu_custom_call.1} parent=1 // pred_fallthru
      _
    // Predicated region
    $region10: #{tpu_custom_call.1} parent=1 // pred_check
      _
    $region11: #{tpu_custom_call.1} parent=1 // pred_check_branch
      %24 = sbr.rel (0) target = $region13
    $region12: #{tpu_custom_call.1} parent=1 // pred_region
      _
    $region13: #{tpu_custom_call.1} parent=1 // pred_fallthru
      _
    // Predicated region
    $region14: #{tpu_custom_call.1} parent=1 // pred_check
      _
    $region15: #{tpu_custom_call.1} parent=1 // pred_check_branch
      %26 = sbr.rel (0) target = $region17
    $region16: #{tpu_custom_call.1} parent=1 // pred_region
      %s28 = ssub.s32 1024, 1024
      %29 = vsyncadd [#allocation3], %s28
      %s30 = sshll.u32 [#allocation2], 4
      %s31 = int_to_ptr.vmem [resolvable:$true] %s30
      %36 = dma.hbm_to_vmem [thread:$0]  %s3, 1024, %s31, [#allocation3], 64, 64, 4
    $region17: #{tpu_custom_call.1} parent=1 // pred_fallthru
      _
    // Predicated region
    $region18: #{tpu_custom_call.1} parent=1 // pred_check
      _
    $region19: #{tpu_custom_call.1} parent=1 // pred_check_branch
      %38 = sbr.rel (0) target = $region21
    $region20: #{tpu_custom_call.1} parent=1 // pred_region
      _
    $region21: #{tpu_custom_call.1} parent=1 // pred_fallthru
      _
    // Predicated region
    $region22: #{tpu_custom_call.1} parent=1 // pred_check
      _
    $region23: #{tpu_custom_call.1} parent=1 // pred_check_branch
      %40 = sbr.rel (0) target = $region25
    $region24: #{tpu_custom_call.1} parent=1 // pred_region
      %s42 = ssub.s32 1024, 1024
      %43 = vsyncadd [#allocation6], %s42
      %s44 = sshll.u32 [#allocation5], 4
      %s45 = int_to_ptr.vmem [resolvable:$true] %s44
      %50 = dma.hbm_to_vmem [thread:$0]  %s5, 1024, %s45, [#allocation6], 64, 64, 4
    $region25: #{tpu_custom_call.1} parent=1 // pred_fallthru
      _
    // Predicated region
    $region26: #{tpu_custom_call.1} parent=1 // pred_check
      _
    $region27: #{tpu_custom_call.1} parent=1 // pred_check_branch
      %52 = sbr.rel (0) target = $region29
    $region28: #{tpu_custom_call.1} parent=1 // pred_region
      _
    $region29: #{tpu_custom_call.1} parent=1 // pred_fallthru
      _
    // Predicated region
    $region30: #{tpu_custom_call.1} parent=1 // pred_check
      _
    $region31: #{tpu_custom_call.1} parent=1 // pred_check_branch
      %54 = sbr.rel (0) target = $region33
    $region32: #{tpu_custom_call.1} parent=1 // pred_region
      %s56 = ssub.s32 1024, 1024
      %57 = vsyncadd [#allocation6], %s56
      %s58 = sshll.u32 [#allocation7], 4
      %s59 = int_to_ptr.vmem [resolvable:$true] %s58
      %64 = dma.hbm_to_vmem [thread:$0]  %s7, 1024, %s59, [#allocation6], 64, 64, 4
    $region33: #{tpu_custom_call.1} parent=1 // pred_fallthru
      _
    // Predicated region
    $region34: #{tpu_custom_call.1} parent=1 // pred_check
      _
    $region35: #{tpu_custom_call.1} parent=1 // pred_check_branch
      %66 = sbr.rel (0) target = $region37
    $region36: #{tpu_custom_call.1} parent=1 // pred_region
      _
    $region37: #{tpu_custom_call.1} parent=1 // pred_fallthru
      _
    // Predicated region
    $region38: #{tpu_custom_call.1} parent=1 // pred_check
      _
    $region39: #{tpu_custom_call.1} parent=1 // pred_check_branch
      %68 = sbr.rel (0) target = $region41
    $region40: #{tpu_custom_call.1} parent=1 // pred_region
      _
    $region41: #{tpu_custom_call.1} parent=1 // pred_fallthru
      _
    // Predicated region
    $region42: #{tpu_custom_call.1} parent=1 // pred_check
      _
    $region43: #{tpu_custom_call.1} parent=1 // pred_check_branch
      %70 = sbr.rel (0) target = $region45
    $region44: #{tpu_custom_call.1} parent=1 // pred_region
      _
    $region45: #{tpu_custom_call.1} parent=1 // pred_fallthru
      _
    // Predicated region
    $region46: #{tpu_custom_call.1} parent=1 // pred_check
      _
    $region47: #{tpu_custom_call.1} parent=1 // pred_check_branch
      %72 = sbr.rel (0) target = $region49
    $region48: #{tpu_custom_call.1} parent=1 // pred_region
      %73 = dma.done [#allocation3], 1024
    $region49: #{tpu_custom_call.1} parent=1 // pred_fallthru
      _
    // Predicated region
    $region50: #{tpu_custom_call.1} parent=1 // pred_check
      _
    $region51: #{tpu_custom_call.1} parent=1 // pred_check_branch
      %75 = sbr.rel (0) target = $region53
    $region52: #{tpu_custom_call.1} parent=1 // pred_region
      %76 = dma.done [#allocation6], 1024
    $region53: #{tpu_custom_call.1} parent=1 // pred_fallthru
      _
    // Predicated region
    $region54: #{tpu_custom_call.1} parent=1 // pred_check
      _
    $region55: #{tpu_custom_call.1} parent=1 // pred_check_branch
      %78 = sbr.rel (0) target = $region57
    $region56: #{tpu_custom_call.1} parent=1 // pred_region
      %79 = dma.done [#allocation6], 1024
    $region57: #{tpu_custom_call.1} parent=1 // pred_fallthru
      _
    %v81 = vld [vmem:[%s0] sm:$0x3]
    %v82 = vpack.c.bf16 %v81, %v81
    %v83 = vld [vmem:[%s1] sm:$0xf]
    %v84 = vld [vmem:[%s1 + $0x4] sm:$0xf]
    %v85 = vld [vmem:[%s1 + $0x8] sm:$0xf]
    %v86 = vld [vmem:[%s1 + $0xc] sm:$0xf]
    %v87 = vld [vmem:[%s1 + $0x10] sm:$0xf]
    %v88 = vld [vmem:[%s1 + $0x14] sm:$0xf]
    %v89 = vld [vmem:[%s1 + $0x18] sm:$0xf]
    %v90 = vld [vmem:[%s1 + $0x1c] sm:$0xf]
    %v91 = vld [vmem:[%s1 + $0x20] sm:$0xf]
    %v92 = vld [vmem:[%s1 + $0x24] sm:$0xf]
    %v93 = vld [vmem:[%s1 + $0x28] sm:$0xf]
    %v94 = vld [vmem:[%s1 + $0x2c] sm:$0xf]
    %v95 = vld [vmem:[%s1 + $0x30] sm:$0xf]
    %v96 = vld [vmem:[%s1 + $0x34] sm:$0xf]
    %v97 = vld [vmem:[%s1 + $0x38] sm:$0xf]
    %v98 = vld [vmem:[%s1 + $0x3c] sm:$0xf]
    %v99 = vld [vmem:[%s2] sm:$0x1]
    %v101 = vlaneseq
    %v102 = vshrl.u32 %v101, 7
    %v103 = vsub.s32 0, %v102
    %v104 = vrot.slane %v99, %v103
    %v122 = vunpack.c.l.b16 %v83
    %v123 = vunpack.c.l.b16 %v84
    %v124 = vunpack.c.l.b16 %v85
    %v125 = vunpack.c.l.b16 %v86
    %v126 = vunpack.c.l.b16 %v87
    %v127 = vunpack.c.l.b16 %v88
    %v128 = vunpack.c.l.b16 %v89
    %v129 = vunpack.c.l.b16 %v90
    %v130 = vunpack.c.l.b16 %v91
    %v131 = vunpack.c.l.b16 %v92
    %v132 = vunpack.c.l.b16 %v93
    %v133 = vunpack.c.l.b16 %v94
    %v134 = vunpack.c.l.b16 %v95
    %v135 = vunpack.c.l.b16 %v96
    %v136 = vunpack.c.l.b16 %v97
    %v137 = vunpack.c.l.b16 %v98
    %v138 = vpack.c.b16 %v123, %v122
    %v139 = vpack.c.b16 %v125, %v124
    %v140 = vpack.c.b16 %v127, %v126
    %v141 = vpack.c.b16 %v129, %v128
    %v142 = vpack.c.b16 %v131, %v130
    %v143 = vpack.c.b16 %v133, %v132
    %v144 = vpack.c.b16 %v135, %v134
    %v145 = vpack.c.b16 %v137, %v136
    %154 = vmatprep.subr.bf16.mxu0 0
    %155 = vmatpush1.bf16.msra.mxu0 %v138
    %156 = vmatprep.subr.bf16.mxu0 0
    %157 = vmatpush1.bf16.msra.mxu0 %v139
    %158 = vmatprep.subr.bf16.mxu0 0
    %159 = vmatpush1.bf16.msra.mxu0 %v140
    %160 = vmatprep.subr.bf16.mxu0 0
    %161 = vmatpush1.bf16.msra.mxu0 %v141
    %162 = vmatprep.subr.bf16.mxu0 0
    %163 = vmatpush1.bf16.msra.mxu0 %v142
    %164 = vmatprep.subr.bf16.mxu0 0
    %165 = vmatpush1.bf16.msra.mxu0 %v143
    %166 = vmatprep.subr.bf16.mxu0 0
    %167 = vmatpush1.bf16.msra.mxu0 %v144
    %168 = vmatprep.subr.bf16.mxu0 0
    %169 = vmatpush1.bf16.msra.mxu0 %v145
    %170 = vmatprep.subr.bf16.mxu0 0
    %171 = vmatpush1.bf16.msra.mxu0 0
    %172 = vmatprep.subr.bf16.mxu0 0
    %173 = vmatpush1.bf16.msra.mxu0 0
    %174 = vmatprep.subr.bf16.mxu0 0
    %175 = vmatpush1.bf16.msra.mxu0 0
    %176 = vmatprep.subr.bf16.mxu0 0
    %177 = vmatpush1.bf16.msra.mxu0 0
    %178 = vmatprep.subr.bf16.mxu0 0
    %179 = vmatpush1.bf16.msra.mxu0 0
    %180 = vmatprep.subr.bf16.mxu0 0
    %181 = vmatpush1.bf16.msra.mxu0 0
    %182 = vmatprep.subr.bf16.mxu0 0
    %183 = vmatpush1.bf16.msra.mxu0 0
    %184 = vmatprep.subr.bf16.mxu0 0
    %185 = vmatpush1.bf16.msra.mxu0 0
    %186 = vmatprep.mubr.bf16.mxu0 0
    %187 = vmatmul.mubr.bf16.gmra.mrb[0].mxu0 %v82
    %v188 = vpop.f32.mrb[0].mxu0
    %v189 = vadd.f32 %v104, %v188
    %v190 = vpop.f32.mrb[0].mxu0
    %v191 = vpop.f32.mrb[0].mxu0
    %v192 = vpop.f32.mrb[0].mxu0
    %193 = vdwg.mxu0
    %v194 = vtanh.pop %v189
    %v195 = vpack.c.bf16 %v194, %v194
    %v196 = vld [vmem:[#allocation2] sm:$0xf]
    %v197 = vld [vmem:[#allocation2 + $0x4] sm:$0xf]
    %v198 = vld [vmem:[#allocation2 + $0x8] sm:$0xf]
    %v199 = vld [vmem:[#allocation2 + $0xc] sm:$0xf]
    %v200 = vld [vmem:[#allocation2 + $0x10] sm:$0xf]
    %v201 = vld [vmem:[#allocation2 + $0x14] sm:$0xf]
    %v202 = vld [vmem:[#allocation2 + $0x18] sm:$0xf]
    %v203 = vld [vmem:[#allocation2 + $0x1c] sm:$0xf]
    %v204 = vld [vmem:[#allocation2 + $0x20] sm:$0xf]
    %v205 = vld [vmem:[#allocation2 + $0x24] sm:$0xf]
    %v206 = vld [vmem:[#allocation2 + $0x28] sm:$0xf]
    %v207 = vld [vmem:[#allocation2 + $0x2c] sm:$0xf]
    %v208 = vld [vmem:[#allocation2 + $0x30] sm:$0xf]
    %v209 = vld [vmem:[#allocation2 + $0x34] sm:$0xf]
    %v210 = vld [vmem:[#allocation2 + $0x38] sm:$0xf]
    %v211 = vld [vmem:[#allocation2 + $0x3c] sm:$0xf]
    %v212 = vld [vmem:[%s4] sm:$0x1]
    %v214 = vlaneseq
    %v215 = vshrl.u32 %v214, 7
    %v216 = vsub.s32 0, %v215
    %v217 = vrot.slane %v212, %v216
    %v235 = vunpack.c.l.b16 %v196
    %v236 = vunpack.c.l.b16 %v197
    %v237 = vunpack.c.l.b16 %v198
    %v238 = vunpack.c.l.b16 %v199
    %v239 = vunpack.c.l.b16 %v200
    %v240 = vunpack.c.l.b16 %v201
    %v241 = vunpack.c.l.b16 %v202
    %v242 = vunpack.c.l.b16 %v203
    %v243 = vunpack.c.l.b16 %v204
    %v244 = vunpack.c.l.b16 %v205
    %v245 = vunpack.c.l.b16 %v206
    %v246 = vunpack.c.l.b16 %v207
    %v247 = vunpack.c.l.b16 %v208
    %v248 = vunpack.c.l.b16 %v209
    %v249 = vunpack.c.l.b16 %v210
    %v250 = vunpack.c.l.b16 %v211
    %v251 = vpack.c.b16 %v236, %v235
    %v252 = vpack.c.b16 %v238, %v237
    %v253 = vpack.c.b16 %v240, %v239
    %v254 = vpack.c.b16 %v242, %v241
    %v255 = vpack.c.b16 %v244, %v243
    %v256 = vpack.c.b16 %v246, %v245
    %v257 = vpack.c.b16 %v248, %v247
    %v258 = vpack.c.b16 %v250, %v249
    %267 = vmatprep.subr.bf16.mxu0 0
    %268 = vmatpush1.bf16.msra.mxu0 %v251
    %269 = vmatprep.subr.bf16.mxu0 0
    %270 = vmatpush1.bf16.msra.mxu0 %v252
    %271 = vmatprep.subr.bf16.mxu0 0
    %272 = vmatpush1.bf16.msra.mxu0 %v253
    %273 = vmatprep.subr.bf16.mxu0 0
    %274 = vmatpush1.bf16.msra.mxu0 %v254
    %275 = vmatprep.subr.bf16.mxu0 0
    %276 = vmatpush1.bf16.msra.mxu0 %v255
    %277 = vmatprep.subr.bf16.mxu0 0
    %278 = vmatpush1.bf16.msra.mxu0 %v256
    %279 = vmatprep.subr.bf16.mxu0 0
    %280 = vmatpush1.bf16.msra.mxu0 %v257
    %281 = vmatprep.subr.bf16.mxu0 0
    %282 = vmatpush1.bf16.msra.mxu0 %v258
    %283 = vmatprep.subr.bf16.mxu0 0
    %284 = vmatpush1.bf16.msra.mxu0 0
    %285 = vmatprep.subr.bf16.mxu0 0
    %286 = vmatpush1.bf16.msra.mxu0 0
    %287 = vmatprep.subr.bf16.mxu0 0
    %288 = vmatpush1.bf16.msra.mxu0 0
    %289 = vmatprep.subr.bf16.mxu0 0
    %290 = vmatpush1.bf16.msra.mxu0 0
    %291 = vmatprep.subr.bf16.mxu0 0
    %292 = vmatpush1.bf16.msra.mxu0 0
    %293 = vmatprep.subr.bf16.mxu0 0
    %294 = vmatpush1.bf16.msra.mxu0 0
    %295 = vmatprep.subr.bf16.mxu0 0
    %296 = vmatpush1.bf16.msra.mxu0 0
    %297 = vmatprep.subr.bf16.mxu0 0
    %298 = vmatpush1.bf16.msra.mxu0 0
    %299 = vmatprep.mubr.bf16.mxu0 0
    %300 = vmatmul.mubr.bf16.gmra.mrb[0].mxu0 %v195
    %v301 = vpop.f32.mrb[0].mxu0
    %v302 = vadd.f32 %v217, %v301
    %v303 = vpop.f32.mrb[0].mxu0
    %v304 = vpop.f32.mrb[0].mxu0
    %v305 = vpop.f32.mrb[0].mxu0
    %306 = vdwg.mxu0
    %v307 = vtanh.pop %v302
    %v308 = vpack.c.bf16 %v307, %v307
    %v309 = vld [vmem:[#allocation5] sm:$0xf]
    %v310 = vld [vmem:[#allocation5 + $0x4] sm:$0xf]
    %v311 = vld [vmem:[#allocation5 + $0x8] sm:$0xf]
    %v312 = vld [vmem:[#allocation5 + $0xc] sm:$0xf]
    %v313 = vld [vmem:[#allocation5 + $0x10] sm:$0xf]
    %v314 = vld [vmem:[#allocation5 + $0x14] sm:$0xf]
    %v315 = vld [vmem:[#allocation5 + $0x18] sm:$0xf]
    %v316 = vld [vmem:[#allocation5 + $0x1c] sm:$0xf]
    %v317 = vld [vmem:[#allocation5 + $0x20] sm:$0xf]
    %v318 = vld [vmem:[#allocation5 + $0x24] sm:$0xf]
    %v319 = vld [vmem:[#allocation5 + $0x28] sm:$0xf]
    %v320 = vld [vmem:[#allocation5 + $0x2c] sm:$0xf]
    %v321 = vld [vmem:[#allocation5 + $0x30] sm:$0xf]
    %v322 = vld [vmem:[#allocation5 + $0x34] sm:$0xf]
    %v323 = vld [vmem:[#allocation5 + $0x38] sm:$0xf]
    %v324 = vld [vmem:[#allocation5 + $0x3c] sm:$0xf]
    %v325 = vld [vmem:[%s6] sm:$0x1]
    %v327 = vlaneseq
    %v328 = vshrl.u32 %v327, 7
    %v329 = vsub.s32 0, %v328
    %v330 = vrot.slane %v325, %v329
    %v348 = vunpack.c.l.b16 %v309
    %v349 = vunpack.c.l.b16 %v310
    %v350 = vunpack.c.l.b16 %v311
    %v351 = vunpack.c.l.b16 %v312
    %v352 = vunpack.c.l.b16 %v313
    %v353 = vunpack.c.l.b16 %v314
    %v354 = vunpack.c.l.b16 %v315
    %v355 = vunpack.c.l.b16 %v316
    %v356 = vunpack.c.l.b16 %v317
    %v357 = vunpack.c.l.b16 %v318
    %v358 = vunpack.c.l.b16 %v319
    %v359 = vunpack.c.l.b16 %v320
    %v360 = vunpack.c.l.b16 %v321
    %v361 = vunpack.c.l.b16 %v322
    %v362 = vunpack.c.l.b16 %v323
    %v363 = vunpack.c.l.b16 %v324
    %v364 = vpack.c.b16 %v349, %v348
    %v365 = vpack.c.b16 %v351, %v350
    %v366 = vpack.c.b16 %v353, %v352
    %v367 = vpack.c.b16 %v355, %v354
    %v368 = vpack.c.b16 %v357, %v356
    %v369 = vpack.c.b16 %v359, %v358
    %v370 = vpack.c.b16 %v361, %v360
    %v371 = vpack.c.b16 %v363, %v362
    %380 = vmatprep.subr.bf16.mxu0 0
    %381 = vmatpush1.bf16.msra.mxu0 %v364
    %382 = vmatprep.subr.bf16.mxu0 0
    %383 = vmatpush1.bf16.msra.mxu0 %v365
    %384 = vmatprep.subr.bf16.mxu0 0
    %385 = vmatpush1.bf16.msra.mxu0 %v366
    %386 = vmatprep.subr.bf16.mxu0 0
    %387 = vmatpush1.bf16.msra.mxu0 %v367
    %388 = vmatprep.subr.bf16.mxu0 0
    %389 = vmatpush1.bf16.msra.mxu0 %v368
    %390 = vmatprep.subr.bf16.mxu0 0
    %391 = vmatpush1.bf16.msra.mxu0 %v369
    %392 = vmatprep.subr.bf16.mxu0 0
    %393 = vmatpush1.bf16.msra.mxu0 %v370
    %394 = vmatprep.subr.bf16.mxu0 0
    %395 = vmatpush1.bf16.msra.mxu0 %v371
    %396 = vmatprep.subr.bf16.mxu0 0
    %397 = vmatpush1.bf16.msra.mxu0 0
    %398 = vmatprep.subr.bf16.mxu0 0
    %399 = vmatpush1.bf16.msra.mxu0 0
    %400 = vmatprep.subr.bf16.mxu0 0
    %401 = vmatpush1.bf16.msra.mxu0 0
    %402 = vmatprep.subr.bf16.mxu0 0
    %403 = vmatpush1.bf16.msra.mxu0 0
    %404 = vmatprep.subr.bf16.mxu0 0
    %405 = vmatpush1.bf16.msra.mxu0 0
    %406 = vmatprep.subr.bf16.mxu0 0
    %407 = vmatpush1.bf16.msra.mxu0 0
    %408 = vmatprep.subr.bf16.mxu0 0
    %409 = vmatpush1.bf16.msra.mxu0 0
    %410 = vmatprep.subr.bf16.mxu0 0
    %411 = vmatpush1.bf16.msra.mxu0 0
    %412 = vmatprep.mubr.bf16.mxu0 0
    %413 = vmatmul.mubr.bf16.gmra.mrb[0].mxu0 %v308
    %v414 = vpop.f32.mrb[0].mxu0
    %v415 = vadd.f32 %v330, %v414
    %v416 = vpop.f32.mrb[0].mxu0
    %v417 = vpop.f32.mrb[0].mxu0
    %v418 = vpop.f32.mrb[0].mxu0
    %419 = vdwg.mxu0
    %v420 = vtanh.pop %v415
    %v421 = vpack.c.bf16 %v420, %v420
    %v422 = vld [vmem:[#allocation7] sm:$0xf]
    %v423 = vld [vmem:[#allocation7 + $0x4] sm:$0xf]
    %v424 = vld [vmem:[#allocation7 + $0x8] sm:$0xf]
    %v425 = vld [vmem:[#allocation7 + $0xc] sm:$0xf]
    %v426 = vld [vmem:[#allocation7 + $0x10] sm:$0xf]
    %v427 = vld [vmem:[#allocation7 + $0x14] sm:$0xf]
    %v428 = vld [vmem:[#allocation7 + $0x18] sm:$0xf]
    %v429 = vld [vmem:[#allocation7 + $0x1c] sm:$0xf]
    %v430 = vld [vmem:[#allocation7 + $0x20] sm:$0xf]
    %v431 = vld [vmem:[#allocation7 + $0x24] sm:$0xf]
    %v432 = vld [vmem:[#allocation7 + $0x28] sm:$0xf]
    %v433 = vld [vmem:[#allocation7 + $0x2c] sm:$0xf]
    %v434 = vld [vmem:[#allocation7 + $0x30] sm:$0xf]
    %v435 = vld [vmem:[#allocation7 + $0x34] sm:$0xf]
    %v436 = vld [vmem:[#allocation7 + $0x38] sm:$0xf]
    %v437 = vld [vmem:[#allocation7 + $0x3c] sm:$0xf]
    %v438 = vld [vmem:[%s8] sm:$0x1]
    %v440 = vlaneseq
    %v441 = vshrl.u32 %v440, 7
    %v442 = vsub.s32 0, %v441
    %v443 = vrot.slane %v438, %v442
    %v461 = vunpack.c.l.b16 %v422
    %v462 = vunpack.c.l.b16 %v423
    %v463 = vunpack.c.l.b16 %v424
    %v464 = vunpack.c.l.b16 %v425
    %v465 = vunpack.c.l.b16 %v426
    %v466 = vunpack.c.l.b16 %v427
    %v467 = vunpack.c.l.b16 %v428
    %v468 = vunpack.c.l.b16 %v429
    %v469 = vunpack.c.l.b16 %v430
    %v470 = vunpack.c.l.b16 %v431
    %v471 = vunpack.c.l.b16 %v432
    %v472 = vunpack.c.l.b16 %v433
    %v473 = vunpack.c.l.b16 %v434
    %v474 = vunpack.c.l.b16 %v435
    %v475 = vunpack.c.l.b16 %v436
    %v476 = vunpack.c.l.b16 %v437
    %v477 = vpack.c.b16 %v462, %v461
    %v478 = vpack.c.b16 %v464, %v463
    %v479 = vpack.c.b16 %v466, %v465
    %v480 = vpack.c.b16 %v468, %v467
    %v481 = vpack.c.b16 %v470, %v469
    %v482 = vpack.c.b16 %v472, %v471
    %v483 = vpack.c.b16 %v474, %v473
    %v484 = vpack.c.b16 %v476, %v475
    %493 = vmatprep.subr.bf16.mxu0 0
    %494 = vmatpush1.bf16.msra.mxu0 %v477
    %495 = vmatprep.subr.bf16.mxu0 0
    %496 = vmatpush1.bf16.msra.mxu0 %v478
    %497 = vmatprep.subr.bf16.mxu0 0
    %498 = vmatpush1.bf16.msra.mxu0 %v479
    %499 = vmatprep.subr.bf16.mxu0 0
    %500 = vmatpush1.bf16.msra.mxu0 %v480
    %501 = vmatprep.subr.bf16.mxu0 0
    %502 = vmatpush1.bf16.msra.mxu0 %v481
    %503 = vmatprep.subr.bf16.mxu0 0
    %504 = vmatpush1.bf16.msra.mxu0 %v482
    %505 = vmatprep.subr.bf16.mxu0 0
    %506 = vmatpush1.bf16.msra.mxu0 %v483
    %507 = vmatprep.subr.bf16.mxu0 0
    %508 = vmatpush1.bf16.msra.mxu0 %v484
    %509 = vmatprep.subr.bf16.mxu0 0
    %510 = vmatpush1.bf16.msra.mxu0 0
    %511 = vmatprep.subr.bf16.mxu0 0
    %512 = vmatpush1.bf16.msra.mxu0 0
    %513 = vmatprep.subr.bf16.mxu0 0
    %514 = vmatpush1.bf16.msra.mxu0 0
    %515 = vmatprep.subr.bf16.mxu0 0
    %516 = vmatpush1.bf16.msra.mxu0 0
    %517 = vmatprep.subr.bf16.mxu0 0
    %518 = vmatpush1.bf16.msra.mxu0 0
    %519 = vmatprep.subr.bf16.mxu0 0
    %520 = vmatpush1.bf16.msra.mxu0 0
    %521 = vmatprep.subr.bf16.mxu0 0
    %522 = vmatpush1.bf16.msra.mxu0 0
    %523 = vmatprep.subr.bf16.mxu0 0
    %524 = vmatpush1.bf16.msra.mxu0 0
    %525 = vmatprep.mubr.bf16.mxu0 0
    %526 = vmatmul.mubr.bf16.gmra.mrb[0].mxu0 %v421
    %v527 = vpop.f32.mrb[0].mxu0
    %v528 = vadd.f32 %v443, %v527
    %v529 = vpop.f32.mrb[0].mxu0
    %v530 = vpop.f32.mrb[0].mxu0
    %v531 = vpop.f32.mrb[0].mxu0
    %532 = vdwg.mxu0
    %v533 = vtanh.pop %v528
    %v534 = vpack.c.bf16 %v533, %v533
    %v535 = vld [vmem:[%s9] sm:$0xf]
    %v536 = vld [vmem:[%s9 + $0x4] sm:$0xf]
    %v537 = vld [vmem:[%s9 + $0x8] sm:$0xf]
    %v538 = vld [vmem:[%s9 + $0xc] sm:$0xf]
    %v539 = vld [vmem:[%s9 + $0x10] sm:$0xf]
    %v540 = vld [vmem:[%s9 + $0x14] sm:$0xf]
    %v541 = vld [vmem:[%s9 + $0x18] sm:$0xf]
    %v542 = vld [vmem:[%s9 + $0x1c] sm:$0xf]
    %v543 = vld [vmem:[%s9 + $0x20] sm:$0xf]
    %v544 = vld [vmem:[%s9 + $0x24] sm:$0xf]
    %v545 = vld [vmem:[%s9 + $0x28] sm:$0xf]
    %v546 = vld [vmem:[%s9 + $0x2c] sm:$0xf]
    %v547 = vld [vmem:[%s9 + $0x30] sm:$0xf]
    %v548 = vld [vmem:[%s9 + $0x34] sm:$0xf]
    %v549 = vld [vmem:[%s9 + $0x38] sm:$0xf]
    %v550 = vld [vmem:[%s9 + $0x3c] sm:$0xf]
    %v551 = vld [vmem:[%s10] sm:$0x1]
    %v553 = vlaneseq
    %v554 = vshrl.u32 %v553, 7
    %v555 = vsub.s32 0, %v554
    %v556 = vrot.slane %v551, %v555
    %v574 = vunpack.c.l.b16 %v535
    %v575 = vunpack.c.l.b16 %v536
    %v576 = vunpack.c.l.b16 %v537
    %v577 = vunpack.c.l.b16 %v538
    %v578 = vunpack.c.l.b16 %v539
    %v579 = vunpack.c.l.b16 %v540
    %v580 = vunpack.c.l.b16 %v541
    %v581 = vunpack.c.l.b16 %v542
    %v582 = vunpack.c.l.b16 %v543
    %v583 = vunpack.c.l.b16 %v544
    %v584 = vunpack.c.l.b16 %v545
    %v585 = vunpack.c.l.b16 %v546
    %v586 = vunpack.c.l.b16 %v547
    %v587 = vunpack.c.l.b16 %v548
    %v588 = vunpack.c.l.b16 %v549
    %v589 = vunpack.c.l.b16 %v550
    %v590 = vpack.c.b16 %v575, %v574
    %v591 = vpack.c.b16 %v577, %v576
    %v592 = vpack.c.b16 %v579, %v578
    %v593 = vpack.c.b16 %v581, %v580
    %v594 = vpack.c.b16 %v583, %v582
    %v595 = vpack.c.b16 %v585, %v584
    %v596 = vpack.c.b16 %v587, %v586
    %v597 = vpack.c.b16 %v589, %v588
    %606 = vmatprep.subr.bf16.mxu0 0
    %607 = vmatpush1.bf16.msra.mxu0 %v590
    %608 = vmatprep.subr.bf16.mxu0 0
    %609 = vmatpush1.bf16.msra.mxu0 %v591
    %610 = vmatprep.subr.bf16.mxu0 0
    %611 = vmatpush1.bf16.msra.mxu0 %v592
    %612 = vmatprep.subr.bf16.mxu0 0
    %613 = vmatpush1.bf16.msra.mxu0 %v593
    %614 = vmatprep.subr.bf16.mxu0 0
    %615 = vmatpush1.bf16.msra.mxu0 %v594
    %616 = vmatprep.subr.bf16.mxu0 0
    %617 = vmatpush1.bf16.msra.mxu0 %v595
    %618 = vmatprep.subr.bf16.mxu0 0
    %619 = vmatpush1.bf16.msra.mxu0 %v596
    %620 = vmatprep.subr.bf16.mxu0 0
    %621 = vmatpush1.bf16.msra.mxu0 %v597
    %622 = vmatprep.subr.bf16.mxu0 0
    %623 = vmatpush1.bf16.msra.mxu0 0
    %624 = vmatprep.subr.bf16.mxu0 0
    %625 = vmatpush1.bf16.msra.mxu0 0
    %626 = vmatprep.subr.bf16.mxu0 0
    %627 = vmatpush1.bf16.msra.mxu0 0
    %628 = vmatprep.subr.bf16.mxu0 0
    %629 = vmatpush1.bf16.msra.mxu0 0
    %630 = vmatprep.subr.bf16.mxu0 0
    %631 = vmatpush1.bf16.msra.mxu0 0
    %632 = vmatprep.subr.bf16.mxu0 0
    %633 = vmatpush1.bf16.msra.mxu0 0
    %634 = vmatprep.subr.bf16.mxu0 0
    %635 = vmatpush1.bf16.msra.mxu0 0
    %636 = vmatprep.subr.bf16.mxu0 0
    %637 = vmatpush1.bf16.msra.mxu0 0
    %638 = vmatprep.mubr.bf16.mxu0 0
    %639 = vmatmul.mubr.bf16.gmra.mrb[0].mxu0 %v534
    %v640 = vpop.f32.mrb[0].mxu0
    %v641 = vadd.f32 %v556, %v640
    %v642 = vpop.f32.mrb[0].mxu0
    %v643 = vpop.f32.mrb[0].mxu0
    %v644 = vpop.f32.mrb[0].mxu0
    %645 = vdwg.mxu0
    %vm646 = vcmask 517120
    %647 = vst.msk [vmem:[#allocation8] sm:$0x3] %vm646, %v641
    // Predicated region
    $region58: #{tpu_custom_call.1} parent=1 // pred_check
      _
    $region59: #{tpu_custom_call.1} parent=1 // pred_check_branch
      %649 = sbr.rel (0) target = $region61
    $region60: #{tpu_custom_call.1} parent=1 // pred_region
      %s651 = ssub.s32 32, 32
      %652 = vsyncadd [#allocation4], %s651
      %s654 = sshll.u32 [#allocation8], 4
      %s655 = int_to_ptr.vmem [resolvable:$true] %s654
      %657 = dma.vmem_to_hbm [thread:$0]  %s655, 32, %s11, [#allocation4]
    $region61: #{tpu_custom_call.1} parent=1 // pred_fallthru
      _
    // Predicated region
    $region62: #{tpu_custom_call.1} parent=1 // pred_check
      _
    $region63: #{tpu_custom_call.1} parent=1 // pred_check_branch
      %659 = sbr.rel (0) target = $region65
    $region64: #{tpu_custom_call.1} parent=1 // pred_region
      %660 = dma.done [#allocation4], 32
    $region65: #{tpu_custom_call.1} parent=1 // pred_fallthru
      _
    %661 = vsyncpa [#allocation3], 1
    %662 = vsyncpa [#allocation6], 1
    %663 = vsyncpa [#allocation4], 1

</llo_original>
